<compile_context>
chip_gen: v7x
topology: tpu7x:2x2x1
jax: 0.10.0
libtpu: 0.0.40
codegen_flags: <defaults>
</compile_context>

<pallas_src>
import numpy as np
import jax
import jax.numpy as jnp
from jax.experimental import pallas as pl
from jax.experimental.pallas import tpu as pltpu


# ---------------------------------------------------------------------------
# Path 1: zero-copy "detach" (identity; genuinely 0 bytes moved).
# ---------------------------------------------------------------------------
def null_embedder_detach(loc_w, tslot_w, sslot_w):
    """weight.detach() analog.

    JAX arrays are immutable and carry no autograd tape, so detach is the
    identity.  Returning the inputs is the only truly zero-copy snapshot and
    avoids the donation / aliasing pitfalls of an aliased pallas_call.
    """
    return loc_w, tslot_w, sslot_w


# ---------------------------------------------------------------------------
# Path 2: independent snapshot copy (single fused, tiled, pipelined call).
# ---------------------------------------------------------------------------
_TILE_BYTES = 4 * 1024 * 1024   # ~4 MiB loc tile: in+out double-buffer = 16 MiB
                                # VMEM, the one size that fits v5e/v6e *and* v7x.


def _snapshot_kernel(loc_ref, tslot_ref, sslot_ref,
                     loc_out_ref, tslot_out_ref, sslot_out_ref):
    # Big table: straight tile copy (mem-bound; VPU/MXU idle by design).
    loc_out_ref[...] = loc_ref[...]
    # Tiny tables: full-array blocks with constant block index.  Writing them
    # unconditionally every grid step is benign (same bytes each time) and
    # guarantees the resident output buffer is valid on every core before the
    # final writeback (important under megacore "parallel" grid sharding).
    tslot_out_ref[...] = tslot_ref[...]
    sslot_out_ref[...] = sslot_ref[...]


def null_embedder_snapshot(loc_w, tslot_w, sslot_w, *, tile_bytes=_TILE_BYTES):
    """Independent device-side copy of the three tables (np.save-style snapshot).

    One pallas_call: loc_w streamed over a 1-D "parallel" row grid (original
    2-D layout, no padding/reshape), tslot/sslot fused in as single full-array
    blocks so no second launch is paid for ~9 KB of data.
    """
    n_rows, d = loc_w.shape
    row_bytes = d * loc_w.dtype.itemsize
    # Largest multiple-of-8 row count whose tile is <= tile_bytes.
    tile_rows = max(8, (tile_bytes // max(row_bytes, 1)) // 8 * 8)
    if tile_rows >= n_rows:
        tile_rows = n_rows      # single full-extent block (legal for any N, D)
    grid_r = pl.cdiv(n_rows, tile_rows)

    loc_out, tslot_out, sslot_out = pl.pallas_call(
        _snapshot_kernel,
        out_shape=(
            jax.ShapeDtypeStruct(loc_w.shape, loc_w.dtype),
            jax.ShapeDtypeStruct(tslot_w.shape, tslot_w.dtype),
            jax.ShapeDtypeStruct(sslot_w.shape, sslot_w.dtype),
        ),
        grid=(grid_r,),
        in_specs=[
            pl.BlockSpec((tile_rows, d), lambda i: (i, 0)),
            pl.BlockSpec(tslot_w.shape, lambda i: (0, 0)),
            pl.BlockSpec(sslot_w.shape, lambda i: (0, 0)),
        ],
        out_specs=(
            pl.BlockSpec((tile_rows, d), lambda i: (i, 0)),
            pl.BlockSpec(tslot_w.shape, lambda i: (0, 0)),
            pl.BlockSpec(sslot_w.shape, lambda i: (0, 0)),
        ),
        compiler_params=pltpu.CompilerParams(
            # "parallel" lets v7x shard the row grid across its 2 TensorCores
            # when grid_r >= 2; no effect on single-TC v5e/v6e.
            dimension_semantics=("parallel",),
            vmem_limit_bytes=32 * 1024 * 1024,
        ),
    )(loc_w, tslot_w, sslot_w)
    return loc_out, tslot_out, sslot_out


def null_embedder_forward(loc_w, tslot_w, sslot_w, zero_copy=False):
    """NullEmbedder.forward analog: returns the three (detached) weight tables."""
    # TODO(synk): np.save(loc_save_path/...) is host file I/O with no Pallas
    # equivalent; the kernel returns the weight snapshots instead.
    if zero_copy:
        return null_embedder_detach(loc_w, tslot_w, sslot_w)
    return null_embedder_snapshot(loc_w, tslot_w, sslot_w)


def init_null_embedder_params(key, loc_size, embed_dim):
    """Deterministic parameter init.

    NullEmbedder.init_weights() only touches 'weight_ih'/'weight_hh'/'bias'
    params, none of which exist here, so the embedding tables keep PyTorch's
    default nn.Embedding init: N(0, 1).
    """
    k_loc, k_t, k_s = jax.random.split(key, 3)
    loc_w = jax.random.normal(k_loc, (loc_size, embed_dim), dtype=jnp.float32)
    tslot_w = jax.random.normal(k_t, (92, 12), dtype=jnp.float32)
    sslot_w = jax.random.normal(k_s, (92, 12), dtype=jnp.float32)
    return loc_w, tslot_w, sslot_w


if __name__ == "__main__":
    key = jax.random.PRNGKey(0)

    # --- small shapes consistent with the module ---------------------------
    loc_size, embed_dim = 32, 16
    loc_w, tslot_w, sslot_w = init_null_embedder_params(key, loc_size, embed_dim)

    loc_np = np.asarray(loc_w)
    tslot_np = np.asarray(tslot_w)
    sslot_np = np.asarray(sslot_w)

    # Snapshot path (single-block loc copy + fused tiny tables).
    loc_c, tslot_c, sslot_c = null_embedder_forward(loc_w, tslot_w, sslot_w,
                                                    zero_copy=False)
    jax.block_until_ready((loc_c, tslot_c, sslot_c))
    assert loc_c.shape == (loc_size, embed_dim) and loc_c.dtype == jnp.float32
    assert tslot_c.shape == (92, 12) and sslot_c.shape == (92, 12)
    assert np.array_equal(np.asarray(loc_c), loc_np)
    assert np.array_equal(np.asarray(tslot_c), tslot_np)
    assert np.array_equal(np.asarray(sslot_c), sslot_np)

    # Multi-block pipelined path: force tile_rows=64 over a 256-row table so
    # the row grid (grid_r=4) and double-buffering are actually exercised.
    loc_big, tslot_b, sslot_b = init_null_embedder_params(
        jax.random.PRNGKey(1), 256, embed_dim)
    loc_big_c, tslot_bc, sslot_bc = null_embedder_snapshot(
        loc_big, tslot_b, sslot_b, tile_bytes=64 * embed_dim * 4)
    jax.block_until_ready((loc_big_c, tslot_bc, sslot_bc))
    assert np.array_equal(np.asarray(loc_big_c), np.asarray(loc_big))
    assert np.array_equal(np.asarray(tslot_bc), np.asarray(tslot_b))
    assert np.array_equal(np.asarray(sslot_bc), np.asarray(sslot_b))

    # Zero-copy detach path (identity, no device work).
    loc_d, tslot_d, sslot_d = null_embedder_forward(loc_w, tslot_w, sslot_w,
                                                    zero_copy=True)
    jax.block_until_ready((loc_d, tslot_d, sslot_d))
    assert np.array_equal(np.asarray(loc_d), loc_np)
    assert np.array_equal(np.asarray(tslot_d), tslot_np)
    assert np.array_equal(np.asarray(sslot_d), sslot_np)

    print("KERNEL_OK")
</pallas_src>

<mosaic_0001>
module attributes {stable_mosaic.version = 11 : i64} {
  func.func @_snapshot_kernel(%arg0: i32, %arg1: memref<32x16xf32, #tpu.memory_space<vmem>>, %arg2: memref<92x12xf32, #tpu.memory_space<vmem>>, %arg3: memref<92x12xf32, #tpu.memory_space<vmem>>, %arg4: memref<32x16xf32, #tpu.memory_space<vmem>>, %arg5: memref<92x12xf32, #tpu.memory_space<vmem>>, %arg6: memref<92x12xf32, #tpu.memory_space<vmem>>) attributes {dimension_semantics = [#tpu.dimension_semantics<parallel>], iteration_bounds = array<i64: 1>, scalar_prefetch = 0 : i64, scratch_operands = 0 : i64, tpu.core_type = #tpu.core_type<tc>, window_params = [{transform_indices = @transform_0, window_bounds = array<i64: 32, 16>}, {pipeline_mode = #tpu.pipeline_mode<synchronous>, transform_indices = @transform_1, window_bounds = array<i64: 92, 12>}, {pipeline_mode = #tpu.pipeline_mode<synchronous>, transform_indices = @transform_2, window_bounds = array<i64: 92, 12>}, {transform_indices = @transform_3, window_bounds = array<i64: 32, 16>}, {pipeline_mode = #tpu.pipeline_mode<synchronous>, transform_indices = @transform_4, window_bounds = array<i64: 92, 12>}, {pipeline_mode = #tpu.pipeline_mode<synchronous>, transform_indices = @transform_5, window_bounds = array<i64: 92, 12>}]} {
    %c0 = arith.constant 0 : index
    %c0_0 = arith.constant 0 : index
    %0 = vector.load %arg1[%c0, %c0_0] : memref<32x16xf32, #tpu.memory_space<vmem>>, vector<32x16xf32>
    %c0_1 = arith.constant 0 : index
    %c0_2 = arith.constant 0 : index
    %1 = vector.load %arg4[%c0_1, %c0_2] : memref<32x16xf32, #tpu.memory_space<vmem>>, vector<32x16xf32>
    tpu.vector_store %arg4[%c0_1, %c0_2], %0 {strides = array<i32>} : memref<32x16xf32, #tpu.memory_space<vmem>>, vector<32x16xf32>,
    %c0_3 = arith.constant 0 : index
    %c0_4 = arith.constant 0 : index
    %2 = vector.load %arg2[%c0_3, %c0_4] : memref<92x12xf32, #tpu.memory_space<vmem>>, vector<92x12xf32>
    %c0_5 = arith.constant 0 : index
    %c0_6 = arith.constant 0 : index
    %3 = vector.load %arg5[%c0_5, %c0_6] : memref<92x12xf32, #tpu.memory_space<vmem>>, vector<92x12xf32>
    tpu.vector_store %arg5[%c0_5, %c0_6], %2 {strides = array<i32>} : memref<92x12xf32, #tpu.memory_space<vmem>>, vector<92x12xf32>,
    %c0_7 = arith.constant 0 : index
    %c0_8 = arith.constant 0 : index
    %4 = vector.load %arg3[%c0_7, %c0_8] : memref<92x12xf32, #tpu.memory_space<vmem>>, vector<92x12xf32>
    %c0_9 = arith.constant 0 : index
    %c0_10 = arith.constant 0 : index
    %5 = vector.load %arg6[%c0_9, %c0_10] : memref<92x12xf32, #tpu.memory_space<vmem>>, vector<92x12xf32>
    tpu.vector_store %arg6[%c0_9, %c0_10], %4 {strides = array<i32>} : memref<92x12xf32, #tpu.memory_space<vmem>>, vector<92x12xf32>,
    return
  }
  func.func @transform_0(%arg0: i32) -> (i32, i32) {
    %c0_i32 = arith.constant 0 : i32
    %c0_i32_0 = arith.constant 0 : i32
    return %arg0, %c0_i32 : i32, i32
  }
  func.func @transform_1(%arg0: i32) -> (i32, i32) {
    %c0_i32 = arith.constant 0 : i32
    %c0_i32_0 = arith.constant 0 : i32
    %c0_i32_1 = arith.constant 0 : i32
    return %c0_i32, %c0_i32_0 : i32, i32
  }
  func.func @transform_2(%arg0: i32) -> (i32, i32) {
    %c0_i32 = arith.constant 0 : i32
    %c0_i32_0 = arith.constant 0 : i32
    %c0_i32_1 = arith.constant 0 : i32
    return %c0_i32, %c0_i32_0 : i32, i32
  }
  func.func @transform_3(%arg0: i32) -> (i32, i32) {
    %c0_i32 = arith.constant 0 : i32
    %c0_i32_0 = arith.constant 0 : i32
    return %arg0, %c0_i32 : i32, i32
  }
  func.func @transform_4(%arg0: i32) -> (i32, i32) {
    %c0_i32 = arith.constant 0 : i32
    %c0_i32_0 = arith.constant 0 : i32
    %c0_i32_1 = arith.constant 0 : i32
    return %c0_i32, %c0_i32_0 : i32, i32
  }
  func.func @transform_5(%arg0: i32) -> (i32, i32) {
    %c0_i32 = arith.constant 0 : i32
    %c0_i32_0 = arith.constant 0 : i32
    %c0_i32_1 = arith.constant 0 : i32
    return %c0_i32, %c0_i32_0 : i32, i32
  }
}

</mosaic_0001>

<llo_original>
// kernel: tpu_custom_call.1
$region0: #{tpu_custom_call.1}
  #allocation0 [shape = 'u32[]', space=smem, size = 0x4, offset = 0x4, fixed_abs, tag = 'smem constant byte address 0x4 - core index']
  #allocation1 [shape = 'u32[144,128]{1,0:T(1,128)}', space=vmem, size = 0x12000, scoped, tag = 'internal scratch']
  %s0 = inlined_call_operand.vmem [shape: f32[32,16], index: 0, kind: input, shape index: {}]
  %s1 = inlined_call_operand.vmem [shape: f32[92,12], index: 1, kind: input, shape index: {}]
  %s2 = inlined_call_operand.vmem [shape: f32[92,12], index: 2, kind: input, shape index: {}]
  %s3 = inlined_call_operand.vmem [shape: f32[32,16], index: 3, kind: output, shape index: {0}]
  %s4 = inlined_call_operand.vmem [shape: f32[92,12], index: 4, kind: output, shape index: {1}]
  %s5 = inlined_call_operand.vmem [shape: f32[92,12], index: 5, kind: output, shape index: {2}]
  %6 = xla_tuple %s3, %s4, %s5
  %s7 = sld [smem:[#allocation0]]
  $region38: #{tpu_custom_call.1} parent=0
    _
  %s9 = ssub.s32 1, %s7
  %s10 = scalar_select 0, %s9, %s7
  // Predicated region
  $region2: #{tpu_custom_call.1} parent=0 // pred_check
    _
  $region3: #{tpu_custom_call.1} parent=0 // pred_check_branch
    %12 = sbr.rel (0) target = $region5
  $region4: #{tpu_custom_call.1} parent=0 // pred_region
    _
  $region5: #{tpu_custom_call.1} parent=0 // pred_fallthru
    _
  // Predicated region
  $region6: #{tpu_custom_call.1} parent=0 // pred_check
    _
  $region7: #{tpu_custom_call.1} parent=0 // pred_check_branch
    %14 = sbr.rel (0) target = $region9
  $region8: #{tpu_custom_call.1} parent=0 // pred_region
    _
  $region9: #{tpu_custom_call.1} parent=0 // pred_fallthru
    _
  // Predicated region
  $region10: #{tpu_custom_call.1} parent=0 // pred_check
    _
  $region11: #{tpu_custom_call.1} parent=0 // pred_check_branch
    %16 = sbr.rel (0) target = $region13
  $region12: #{tpu_custom_call.1} parent=0 // pred_region
    _
  $region13: #{tpu_custom_call.1} parent=0 // pred_fallthru
    _
  %v17 = vld [vmem:[%s0] sm:$0xff]
  %v18 = vld [vmem:[%s0 + $0x8] sm:$0xff]
  %v19 = vld [vmem:[%s0 + $0x10] sm:$0xff]
  %v20 = vld [vmem:[%s0 + $0x18] sm:$0xff]
  %vm21 = vcmask 130048
  %22 = vst.msk [vmem:[%s3] sm:$0xff] %vm21, %v17
  %23 = vst.msk [vmem:[%s3 + $0x8] sm:$0xff] %vm21, %v18
  %24 = vst.msk [vmem:[%s3 + $0x10] sm:$0xff] %vm21, %v19
  %25 = vst.msk [vmem:[%s3 + $0x18] sm:$0xff] %vm21, %v20
  %v26 = vld [vmem:[%s1] sm:$0xff]
  %v27 = vld [vmem:[%s1 + $0x8] sm:$0xff]
  %v28 = vld [vmem:[%s1 + $0x10] sm:$0xff]
  %v29 = vld [vmem:[%s1 + $0x18] sm:$0xff]
  %v30 = vld [vmem:[%s1 + $0x20] sm:$0xff]
  %v31 = vld [vmem:[%s1 + $0x28] sm:$0xff]
  %v32 = vld [vmem:[%s1 + $0x30] sm:$0xff]
  %v33 = vld [vmem:[%s1 + $0x38] sm:$0xff]
  %v34 = vld [vmem:[%s1 + $0x40] sm:$0xff]
  %v35 = vld [vmem:[%s1 + $0x48] sm:$0xff]
  %v36 = vld [vmem:[%s1 + $0x50] sm:$0xff]
  %v37 = vld [vmem:[%s1 + $0x58] sm:$0xf]
  %vm38 = vcmask 97280
  %39 = vst.msk [vmem:[%s4] sm:$0xff] %vm38, %v26
  %40 = vst.msk [vmem:[%s4 + $0x8] sm:$0xff] %vm38, %v27
  %41 = vst.msk [vmem:[%s4 + $0x10] sm:$0xff] %vm38, %v28
  %42 = vst.msk [vmem:[%s4 + $0x18] sm:$0xff] %vm38, %v29
  %43 = vst.msk [vmem:[%s4 + $0x20] sm:$0xff] %vm38, %v30
  %44 = vst.msk [vmem:[%s4 + $0x28] sm:$0xff] %vm38, %v31
  %45 = vst.msk [vmem:[%s4 + $0x30] sm:$0xff] %vm38, %v32
  %46 = vst.msk [vmem:[%s4 + $0x38] sm:$0xff] %vm38, %v33
  %47 = vst.msk [vmem:[%s4 + $0x40] sm:$0xff] %vm38, %v34
  %48 = vst.msk [vmem:[%s4 + $0x48] sm:$0xff] %vm38, %v35
  %49 = vst.msk [vmem:[%s4 + $0x50] sm:$0xff] %vm38, %v36
  %vm50 = vcmask 93184
  %51 = vst.msk [vmem:[%s4 + $0x58] sm:$0xf] %vm50, %v37
  %v52 = vld [vmem:[%s2] sm:$0xff]
  %v53 = vld [vmem:[%s2 + $0x8] sm:$0xff]
  %v54 = vld [vmem:[%s2 + $0x10] sm:$0xff]
  %v55 = vld [vmem:[%s2 + $0x18] sm:$0xff]
  %v56 = vld [vmem:[%s2 + $0x20] sm:$0xff]
  %v57 = vld [vmem:[%s2 + $0x28] sm:$0xff]
  %v58 = vld [vmem:[%s2 + $0x30] sm:$0xff]
  %v59 = vld [vmem:[%s2 + $0x38] sm:$0xff]
  %v60 = vld [vmem:[%s2 + $0x40] sm:$0xff]
  %v61 = vld [vmem:[%s2 + $0x48] sm:$0xff]
  %v62 = vld [vmem:[%s2 + $0x50] sm:$0xff]
  %v63 = vld [vmem:[%s2 + $0x58] sm:$0xf]
  %64 = vst.msk [vmem:[%s5] sm:$0xff] %vm38, %v52
  %65 = vst.msk [vmem:[%s5 + $0x8] sm:$0xff] %vm38, %v53
  %66 = vst.msk [vmem:[%s5 + $0x10] sm:$0xff] %vm38, %v54
  %67 = vst.msk [vmem:[%s5 + $0x18] sm:$0xff] %vm38, %v55
  %68 = vst.msk [vmem:[%s5 + $0x20] sm:$0xff] %vm38, %v56
  %69 = vst.msk [vmem:[%s5 + $0x28] sm:$0xff] %vm38, %v57
  %70 = vst.msk [vmem:[%s5 + $0x30] sm:$0xff] %vm38, %v58
  %71 = vst.msk [vmem:[%s5 + $0x38] sm:$0xff] %vm38, %v59
  %72 = vst.msk [vmem:[%s5 + $0x40] sm:$0xff] %vm38, %v60
  %73 = vst.msk [vmem:[%s5 + $0x48] sm:$0xff] %vm38, %v61
  %74 = vst.msk [vmem:[%s5 + $0x50] sm:$0xff] %vm38, %v62
  %75 = vst.msk [vmem:[%s5 + $0x58] sm:$0xf] %vm50, %v63
  // Predicated region
  $region14: #{tpu_custom_call.1} parent=0 // pred_check
    _
  $region15: #{tpu_custom_call.1} parent=0 // pred_check_branch
    %77 = sbr.rel (0) target = $region17
  $region16: #{tpu_custom_call.1} parent=0 // pred_region
    _
  $region17: #{tpu_custom_call.1} parent=0 // pred_fallthru
    _
  // Predicated region
  $region18: #{tpu_custom_call.1} parent=0 // pred_check
    _
  $region19: #{tpu_custom_call.1} parent=0 // pred_check_branch
    %79 = sbr.rel (0) target = $region21
  $region20: #{tpu_custom_call.1} parent=0 // pred_region
    _
  $region21: #{tpu_custom_call.1} parent=0 // pred_fallthru
    _
  // Predicated region
  $region22: #{tpu_custom_call.1} parent=0 // pred_check
    _
  $region23: #{tpu_custom_call.1} parent=0 // pred_check_branch
    %81 = sbr.rel (0) target = $region25
  $region24: #{tpu_custom_call.1} parent=0 // pred_region
    _
  $region25: #{tpu_custom_call.1} parent=0 // pred_fallthru
    _
  // Predicated region
  $region26: #{tpu_custom_call.1} parent=0 // pred_check
    _
  $region27: #{tpu_custom_call.1} parent=0 // pred_check_branch
    %83 = sbr.rel (0) target = $region29
  $region28: #{tpu_custom_call.1} parent=0 // pred_region
    _
  $region29: #{tpu_custom_call.1} parent=0 // pred_fallthru
    _
  // Predicated region
  $region30: #{tpu_custom_call.1} parent=0 // pred_check
    _
  $region31: #{tpu_custom_call.1} parent=0 // pred_check_branch
    %85 = sbr.rel (0) target = $region33
  $region32: #{tpu_custom_call.1} parent=0 // pred_region
    _
  $region33: #{tpu_custom_call.1} parent=0 // pred_fallthru
    _
  // Predicated region
  $region34: #{tpu_custom_call.1} parent=0 // pred_check
    _
  $region35: #{tpu_custom_call.1} parent=0 // pred_check_branch
    %87 = sbr.rel (0) target = $region37
  $region36: #{tpu_custom_call.1} parent=0 // pred_region
    _
  $region37: #{tpu_custom_call.1} parent=0 // pred_fallthru
    _

</llo_original>
